<compile_context>
chip_gen: v7x
topology: tpu7x:2x2x1
jax: 0.10.0
libtpu: 0.0.40
codegen_flags: <defaults>
</compile_context>

<pallas_src>
import jax
import jax.numpy as jnp
from jax.experimental import pallas as pl
from jax.experimental.pallas import tpu as pltpu

# ---- model / problem sizes -------------------------------------------------
N      = 16                 # nodes per graph
F_IN   = 4                  # input feature dim       (module arg `input`)
HIDDEN = 32                 # hidden dim              (module arg `hidden`)
H_NUM  = 4                  # direct virtual nodes    (forward arg `h_num`)
LAYERS = 2                  # module default -> 1 GATConv in module_list

# ---- batching layout -------------------------------------------------------
G     = 8                   # graphs fused per grid step (disjoint union)
B     = 16                  # total graphs per call
SB    = B // G              # grid size (=2 -> one step per v7x TensorCore)
GN    = G * N               # 128 union nodes per step == the 128 lanes
F_PAD = 8                   # x features padded 4 -> 8 (one f32 sublane tile)

# ---- packed parameter slab (one resident HBM->VMEM DMA for all params) -----
# Weights are stored TRANSPOSED and score-fused:
#   wT = [ W | W a_src^T | W a_dst^T ]^T      shape (HIDDEN+2, D_in)
PACK   = HIDDEN + 2         # rows per packed transposed weight
PCOLS  = HIDDEN             # slab width (layer-1 contraction dim)
ROW_W0 = 0                  # rows   0.. 33 : layer-0 wT (cols 0..F_PAD-1 used)
ROW_W1 = 40                 # rows  40.. 73 : layer-1 wT (cols 0..HIDDEN-1 used)
ROW_B0 = 80                 # rows  80..111 : layer-0 bias as a column (col 0)
ROW_B1 = 112                # rows 112..143 : layer-1 bias as a column (col 0)
PROWS  = 144


def _leaky_relu(x, slope=0.2):
    return jnp.where(x > 0, x, slope * x)


def _gat_layer_t(h_t, adj, w_t, b_col):
    """Single-head GATConv (heads=1, negative_slope=0.2, dropout=0), transposed.

    h_t   : (D_in, GN)     f32  input features, nodes on lanes
    adj   : (GN, GN)       i8   block-diagonal adjacency (incl. self loops), symmetric
    w_t   : (HIDDEN+2, D_in) f32  [W | W a_src^T | W a_dst^T]^T
    b_col : (HIDDEN, 1)    f32  output bias as a column
    returns (HIDDEN, GN) f32
    """
    xw_t = jnp.dot(w_t.astype(jnp.bfloat16), h_t.astype(jnp.bfloat16),
                   preferred_element_type=jnp.float32)           # (HIDDEN+2, GN)
    feat_t = xw_t[:HIDDEN]                                       # (W h_j)^T
    src_t  = xw_t[HIDDEN:HIDDEN + 1]                             # (1, GN): a_src . W h_j
    dst_t  = xw_t[HIDDEN + 1:HIDDEN + 2]                         # (1, GN): a_dst . W h_i
    # e^T[j, i] = leaky_relu(dst[i] + src[j]); adjacency is symmetric so the
    # untransposed int8 mask indexes correctly; -1e30 bias built in-kernel.
    e = jnp.where(adj != 0, _leaky_relu(dst_t + src_t.T), jnp.float32(-1e30))
    # softmax over neighbours j == sublane (axis-0) reduction
    e = e - jnp.max(e, axis=0, keepdims=True)
    p = jnp.exp(e)
    # denom >= 1 (the per-column max exp's to exactly 1; self loops guarantee a
    # finite max) -> approx reciprocal on the EUP is safe here.
    alpha_t = p * pl.reciprocal(jnp.sum(p, axis=0, keepdims=True), approx=True)
    out_t = jnp.dot(feat_t.astype(jnp.bfloat16), alpha_t.astype(jnp.bfloat16),
                    preferred_element_type=jnp.float32)          # (HIDDEN, GN)
    return out_t + b_col


def gnn_vn_kernel(params_ref, x_ref, adj_ref, out_ref):
    # one packed parameter slab, static slices (single DMA, stays resident)
    w0_t = params_ref[ROW_W0:ROW_W0 + PACK, 0:F_PAD]     # (34, 8)
    w1_t = params_ref[ROW_W1:ROW_W1 + PACK, :]           # (34, 32)
    b0_c = params_ref[ROW_B0:ROW_B0 + HIDDEN, 0:1]       # (32, 1)
    b1_c = params_ref[ROW_B1:ROW_B1 + HIDDEN, 0:1]       # (32, 1)

    x_t = x_ref[0]                                       # (F_PAD, GN) f32
    adj = adj_ref[0]                                     # (GN, GN)    int8

    h = _gat_layer_t(x_t, adj, w0_t, b0_c)               # self.initial
    # layers=2 + constant-0 virtualnode_embedding: the `out + vn_direct[h_blocks]`
    # add is zero and every VN update after the final GAT layer is dead (forward
    # returns only `out`), so the virtual-node pool / MLP path is elided.
    h = _gat_layer_t(h, adj, w1_t, b1_c)                 # self.module_list[0]
    out_ref[0] = h.astype(out_ref.dtype)                 # (32, 128) lane-dense bf16


@jax.jit
def gnn_vn_forward(param_slab, x_union_t, adj_union):
    sb = x_union_t.shape[0]
    return pl.pallas_call(
        gnn_vn_kernel,
        out_shape=jax.ShapeDtypeStruct((sb, HIDDEN, GN), jnp.bfloat16),
        grid_spec=pltpu.PrefetchScalarGridSpec(
            num_scalar_prefetch=0,
            grid=(sb,),
            in_specs=[
                pl.BlockSpec((PROWS, PCOLS), lambda s: (0, 0)),     # resident params
                pl.BlockSpec((1, F_PAD, GN), lambda s: (s, 0, 0)),  # x^T per step
                pl.BlockSpec((1, GN, GN), lambda s: (s, 0, 0)),     # int8 adjacency
            ],
            out_specs=pl.BlockSpec((1, HIDDEN, GN), lambda s: (s, 0, 0)),
        ),
        compiler_params=pltpu.CompilerParams(
            dimension_semantics=("parallel",)),
    )(param_slab, x_union_t, adj_union)


# ---- host-side parameter packing -------------------------------------------
def pack_params(w0, as0, ad0, b0, w1, as1, ad1, b1):
    hp = jax.lax.Precision.HIGHEST
    w0p = jnp.concatenate(
        [w0, jnp.dot(w0, as0.T, precision=hp), jnp.dot(w0, ad0.T, precision=hp)],
        axis=1)                                           # (F_IN, HIDDEN+2)
    w1p = jnp.concatenate(
        [w1, jnp.dot(w1, as1.T, precision=hp), jnp.dot(w1, ad1.T, precision=hp)],
        axis=1)                                           # (HIDDEN, HIDDEN+2)
    slab = jnp.zeros((PROWS, PCOLS), jnp.float32)
    slab = slab.at[ROW_W0:ROW_W0 + PACK, 0:F_IN].set(w0p.T)
    slab = slab.at[ROW_W1:ROW_W1 + PACK, 0:HIDDEN].set(w1p.T)
    slab = slab.at[ROW_B0:ROW_B0 + HIDDEN, 0].set(b0[0])
    slab = slab.at[ROW_B1:ROW_B1 + HIDDEN, 0].set(b1[0])
    return slab


# ---- independent (non-fused) reference, per graph ---------------------------
_HP = jax.lax.Precision.HIGHEST


def _gat_ref(h, adj, w, a_src, a_dst, bias):
    xw = jnp.dot(h, w, precision=_HP)
    e = jnp.dot(xw, a_dst.T, precision=_HP) + jnp.dot(xw, a_src.T, precision=_HP).T
    e = jax.nn.leaky_relu(e, negative_slope=0.2)
    e = jnp.where(adj > 0, e, -jnp.inf)
    alpha = jax.nn.softmax(e, axis=-1)
    return jnp.dot(alpha, xw, precision=_HP) + bias


def reference_forward(x, adj, params):
    w0, as0, ad0, b0, w1, as1, ad1, b1 = params
    out = _gat_ref(x, adj, w0, as0, ad0, b0)
    # virtualnode_embedding is constant-0 initialized -> this add is a no-op,
    # kept here for fidelity to the PyTorch forward.
    vn_direct = jnp.zeros((H_NUM, HIDDEN), jnp.float32)
    h_blocks = jnp.arange(N) // (N // H_NUM)
    out = out + vn_direct[h_blocks]
    out = _gat_ref(out, adj, w1, as1, ad1, b1)
    # VN pool + MLP updates after the final layer never feed `out`.
    return out


if __name__ == "__main__":
    key = jax.random.PRNGKey(0)
    ks = jax.random.split(key, 8)

    def glorot(k, shape):
        lim = jnp.sqrt(6.0 / (shape[0] + shape[-1]))
        return jax.random.uniform(k, shape, jnp.float32, -lim, lim)

    # GATConv(F_IN, HIDDEN) and GATConv(HIDDEN, HIDDEN) parameters (heads=1).
    # mlp_virtualnode_list / self.output / self.activation weights are never
    # observable in forward() for layers=2, so they are not materialized.
    w0  = glorot(ks[0], (F_IN, HIDDEN))
    as0 = glorot(ks[1], (1, HIDDEN))
    ad0 = glorot(ks[2], (1, HIDDEN))
    b0  = jnp.zeros((1, HIDDEN), jnp.float32)
    w1  = glorot(ks[3], (HIDDEN, HIDDEN))
    as1 = glorot(ks[4], (1, HIDDEN))
    ad1 = glorot(ks[5], (1, HIDDEN))
    b1  = jnp.zeros((1, HIDDEN), jnp.float32)
    params = (w0, as0, ad0, b0, w1, as1, ad1, b1)
    slab = pack_params(*params)

    # B independent random graphs (undirected + self-loops) and node features.
    x = jax.random.normal(ks[6], (B, N, F_IN), jnp.float32)
    a = jax.random.bernoulli(ks[7], 0.3, (B, N, N)).astype(jnp.float32)
    adj = jnp.maximum(a, jnp.transpose(a, (0, 2, 1)))
    adj = jnp.maximum(adj, jnp.eye(N, dtype=jnp.float32)[None])

    # Pack B graphs into SB disjoint-union super-graphs of GN = 128 nodes,
    # transposed so the union nodes sit on the 128 lanes; adjacency becomes a
    # block-diagonal int8 mask (bias rebuilt in-kernel).
    x_pad = jnp.pad(x, ((0, 0), (0, 0), (0, F_PAD - F_IN)))
    x_union_t = jnp.transpose(x_pad.reshape(SB, GN, F_PAD), (0, 2, 1))  # (SB, F_PAD, GN)
    adj_bd = jnp.einsum('sgij,gh->sgihj',
                        adj.reshape(SB, G, N, N),
                        jnp.eye(G, dtype=jnp.float32)).reshape(SB, GN, GN)
    adj_union = (adj_bd > 0).astype(jnp.int8)

    out_t = gnn_vn_forward(slab, x_union_t, adj_union)       # (SB, HIDDEN, GN) bf16
    out_t = jax.block_until_ready(out_t)
    out = jnp.transpose(out_t.astype(jnp.float32), (0, 2, 1)).reshape(B, N, HIDDEN)

    ref = jax.vmap(lambda xb, ab: reference_forward(xb, ab, params))(x, adj)
    assert out.shape == (B, N, HIDDEN)
    # bf16 MXU operands + bf16 output vs f32 HIGHEST-precision reference.
    assert jnp.allclose(out, ref, rtol=2e-2, atol=2e-2), "kernel/reference mismatch"

    print("KERNEL_OK")
</pallas_src>

<mosaic_0001>
module attributes {stable_mosaic.version = 11 : i64} {
  func.func @gnn_vn_kernel(%arg0: i32, %arg1: memref<144x32xf32, #tpu.memory_space<vmem>>, %arg2: memref<1x8x128xf32, #tpu.memory_space<vmem>>, %arg3: memref<1x128x128xi8, #tpu.memory_space<vmem>>, %arg4: memref<1x32x128xbf16, #tpu.memory_space<vmem>>) attributes {dimension_semantics = [#tpu.dimension_semantics<parallel>], iteration_bounds = array<i64: 2>, scalar_prefetch = 0 : i64, scratch_operands = 0 : i64, tpu.core_type = #tpu.core_type<tc>, window_params = [{pipeline_mode = #tpu.pipeline_mode<synchronous>, transform_indices = @transform_0, window_bounds = array<i64: 144, 32>}, {transform_indices = @transform_1, window_bounds = array<i64: 1, 8, 128>}, {transform_indices = @transform_2, window_bounds = array<i64: 1, 128, 128>}, {transform_indices = @transform_3, window_bounds = array<i64: 1, 32, 128>}]} {
    %c0 = arith.constant 0 : index
    %c0_0 = arith.constant 0 : index
    %0 = vector.load %arg1[%c0, %c0_0] : memref<144x32xf32, #tpu.memory_space<vmem>>, vector<34x8xf32>
    %c40 = arith.constant 40 : index
    %c0_1 = arith.constant 0 : index
    %1 = vector.load %arg1[%c40, %c0_1] : memref<144x32xf32, #tpu.memory_space<vmem>>, vector<34x32xf32>
    %c80 = arith.constant 80 : index
    %c0_2 = arith.constant 0 : index
    %2 = vector.load %arg1[%c80, %c0_2] : memref<144x32xf32, #tpu.memory_space<vmem>>, vector<32x1xf32>
    %c112 = arith.constant 112 : index
    %c0_3 = arith.constant 0 : index
    %3 = vector.load %arg1[%c112, %c0_3] : memref<144x32xf32, #tpu.memory_space<vmem>>, vector<32x1xf32>
    %c0_4 = arith.constant 0 : index
    %c0_5 = arith.constant 0 : index
    %c0_6 = arith.constant 0 : index
    %4 = vector.load %arg2[%c0_4, %c0_5, %c0_6] : memref<1x8x128xf32, #tpu.memory_space<vmem>>, vector<1x8x128xf32>
    %5 = vector.shape_cast %4 : vector<1x8x128xf32> to vector<8x128xf32>
    %c0_7 = arith.constant 0 : index
    %c0_8 = arith.constant 0 : index
    %c0_9 = arith.constant 0 : index
    %6 = vector.load %arg3[%c0_7, %c0_8, %c0_9] : memref<1x128x128xi8, #tpu.memory_space<vmem>>, vector<1x128x128xi8>
    %7 = vector.shape_cast %6 : vector<1x128x128xi8> to vector<128x128xi8>
    %8 = arith.truncf %0 : vector<34x8xf32> to vector<34x8xbf16>
    %9 = arith.truncf %5 : vector<8x128xf32> to vector<8x128xbf16>
    %cst = arith.constant dense<0.000000e+00> : vector<34x128xf32>
    %10 = tpu.matmul %8, %9, %cst {dimension_numbers = #tpu.dot_dimension_numbers<[1], [0], [0], [1], [0, 0, 1, 1], [], []>} : vector<34x8xbf16>, vector<8x128xbf16>, vector<34x128xf32> -> vector<34x128xf32>
    %11 = vector.extract_strided_slice %10 {offsets = [0, 0], sizes = [32, 128], strides = [1, 1]} : vector<34x128xf32> to vector<32x128xf32>
    %12 = vector.extract_strided_slice %10 {offsets = [32, 0], sizes = [1, 128], strides = [1, 1]} : vector<34x128xf32> to vector<1x128xf32>
    %13 = vector.extract_strided_slice %10 {offsets = [33, 0], sizes = [1, 128], strides = [1, 1]} : vector<34x128xf32> to vector<1x128xf32>
    %c0_i8 = arith.constant 0 : i8
    %14 = vector.broadcast %c0_i8 : i8 to vector<128x128xi8>
    %15 = arith.cmpi ne, %7, %14 : vector<128x128xi8>
    %16 = tpu.transpose %12, [1, 0] : vector<1x128xf32> -> vector<128x1xf32>
    %17 = vector.broadcast %13 : vector<1x128xf32> to vector<128x128xf32>
    %18 = vector.broadcast %16 : vector<128x1xf32> to vector<128x128xf32>
    %19 = arith.addf %17, %18 : vector<128x128xf32>
    %cst_10 = arith.constant 0.000000e+00 : f32
    %20 = vector.broadcast %cst_10 : f32 to vector<128x128xf32>
    %21 = arith.cmpf ogt, %19, %20 : vector<128x128xf32>
    %cst_11 = arith.constant 2.000000e-01 : f32
    %22 = vector.broadcast %cst_11 : f32 to vector<128x128xf32>
    %23 = arith.mulf %22, %19 : vector<128x128xf32>
    %24 = arith.select %21, %19, %23 : vector<128x128xi1>, vector<128x128xf32>
    %cst_12 = arith.constant -1.000000e+30 : f32
    %25 = vector.broadcast %cst_12 : f32 to vector<128x128xf32>
    %26 = arith.select %15, %24, %25 : vector<128x128xi1>, vector<128x128xf32>
    %cst_13 = arith.constant dense<0xFF800000> : vector<128xf32>
    %27 = vector.multi_reduction <maximumf>, %26, %cst_13 [0] : vector<128x128xf32> to vector<128xf32>
    %28 = vector.shape_cast %27 : vector<128xf32> to vector<1x128xf32>
    %29 = vector.broadcast %28 : vector<1x128xf32> to vector<128x128xf32>
    %30 = arith.subf %26, %29 : vector<128x128xf32>
    %31 = math.exp %30 : vector<128x128xf32>
    %cst_14 = arith.constant dense<0.000000e+00> : vector<128xf32>
    %32 = vector.multi_reduction <add>, %31, %cst_14 [0] : vector<128x128xf32> to vector<128xf32>
    %33 = vector.shape_cast %32 : vector<128xf32> to vector<1x128xf32>
    %34 = tpu.reciprocal %33 {approx = true} : vector<1x128xf32> -> vector<1x128xf32>
    %35 = vector.broadcast %34 : vector<1x128xf32> to vector<128x128xf32>
    %36 = arith.mulf %31, %35 : vector<128x128xf32>
    %37 = arith.truncf %11 : vector<32x128xf32> to vector<32x128xbf16>
    %38 = arith.truncf %36 : vector<128x128xf32> to vector<128x128xbf16>
    %cst_15 = arith.constant dense<0.000000e+00> : vector<32x128xf32>
    %39 = tpu.matmul %37, %38, %cst_15 {dimension_numbers = #tpu.dot_dimension_numbers<[1], [0], [0], [1], [0, 0, 1, 1], [], []>} : vector<32x128xbf16>, vector<128x128xbf16>, vector<32x128xf32> -> vector<32x128xf32>
    %40 = vector.broadcast %2 : vector<32x1xf32> to vector<32x128xf32>
    %41 = arith.addf %39, %40 : vector<32x128xf32>
    %42 = arith.truncf %1 : vector<34x32xf32> to vector<34x32xbf16>
    %43 = arith.truncf %41 : vector<32x128xf32> to vector<32x128xbf16>
    %cst_16 = arith.constant dense<0.000000e+00> : vector<34x128xf32>
    %44 = tpu.matmul %42, %43, %cst_16 {dimension_numbers = #tpu.dot_dimension_numbers<[1], [0], [0], [1], [0, 0, 1, 1], [], []>} : vector<34x32xbf16>, vector<32x128xbf16>, vector<34x128xf32> -> vector<34x128xf32>
    %45 = vector.extract_strided_slice %44 {offsets = [0, 0], sizes = [32, 128], strides = [1, 1]} : vector<34x128xf32> to vector<32x128xf32>
    %46 = vector.extract_strided_slice %44 {offsets = [32, 0], sizes = [1, 128], strides = [1, 1]} : vector<34x128xf32> to vector<1x128xf32>
    %47 = vector.extract_strided_slice %44 {offsets = [33, 0], sizes = [1, 128], strides = [1, 1]} : vector<34x128xf32> to vector<1x128xf32>
    %c0_i8_17 = arith.constant 0 : i8
    %48 = vector.broadcast %c0_i8_17 : i8 to vector<128x128xi8>
    %49 = arith.cmpi ne, %7, %48 : vector<128x128xi8>
    %50 = tpu.transpose %46, [1, 0] : vector<1x128xf32> -> vector<128x1xf32>
    %51 = vector.broadcast %47 : vector<1x128xf32> to vector<128x128xf32>
    %52 = vector.broadcast %50 : vector<128x1xf32> to vector<128x128xf32>
    %53 = arith.addf %51, %52 : vector<128x128xf32>
    %cst_18 = arith.constant 0.000000e+00 : f32
    %54 = vector.broadcast %cst_18 : f32 to vector<128x128xf32>
    %55 = arith.cmpf ogt, %53, %54 : vector<128x128xf32>
    %cst_19 = arith.constant 2.000000e-01 : f32
    %56 = vector.broadcast %cst_19 : f32 to vector<128x128xf32>
    %57 = arith.mulf %56, %53 : vector<128x128xf32>
    %58 = arith.select %55, %53, %57 : vector<128x128xi1>, vector<128x128xf32>
    %cst_20 = arith.constant -1.000000e+30 : f32
    %59 = vector.broadcast %cst_20 : f32 to vector<128x128xf32>
    %60 = arith.select %49, %58, %59 : vector<128x128xi1>, vector<128x128xf32>
    %cst_21 = arith.constant dense<0xFF800000> : vector<128xf32>
    %61 = vector.multi_reduction <maximumf>, %60, %cst_21 [0] : vector<128x128xf32> to vector<128xf32>
    %62 = vector.shape_cast %61 : vector<128xf32> to vector<1x128xf32>
    %63 = vector.broadcast %62 : vector<1x128xf32> to vector<128x128xf32>
    %64 = arith.subf %60, %63 : vector<128x128xf32>
    %65 = math.exp %64 : vector<128x128xf32>
    %cst_22 = arith.constant dense<0.000000e+00> : vector<128xf32>
    %66 = vector.multi_reduction <add>, %65, %cst_22 [0] : vector<128x128xf32> to vector<128xf32>
    %67 = vector.shape_cast %66 : vector<128xf32> to vector<1x128xf32>
    %68 = tpu.reciprocal %67 {approx = true} : vector<1x128xf32> -> vector<1x128xf32>
    %69 = vector.broadcast %68 : vector<1x128xf32> to vector<128x128xf32>
    %70 = arith.mulf %65, %69 : vector<128x128xf32>
    %71 = arith.truncf %45 : vector<32x128xf32> to vector<32x128xbf16>
    %72 = arith.truncf %70 : vector<128x128xf32> to vector<128x128xbf16>
    %cst_23 = arith.constant dense<0.000000e+00> : vector<32x128xf32>
    %73 = tpu.matmul %71, %72, %cst_23 {dimension_numbers = #tpu.dot_dimension_numbers<[1], [0], [0], [1], [0, 0, 1, 1], [], []>} : vector<32x128xbf16>, vector<128x128xbf16>, vector<32x128xf32> -> vector<32x128xf32>
    %74 = vector.broadcast %3 : vector<32x1xf32> to vector<32x128xf32>
    %75 = arith.addf %73, %74 : vector<32x128xf32>
    %76 = arith.truncf %75 : vector<32x128xf32> to vector<32x128xbf16>
    %c0_24 = arith.constant 0 : index
    %c0_25 = arith.constant 0 : index
    %c0_26 = arith.constant 0 : index
    %77 = vector.load %arg4[%c0_24, %c0_25, %c0_26] : memref<1x32x128xbf16, #tpu.memory_space<vmem>>, vector<1x32x128xbf16>
    %78 = vector.shape_cast %77 : vector<1x32x128xbf16> to vector<32x128xbf16>
    %79 = vector.shape_cast %76 : vector<32x128xbf16> to vector<1x32x128xbf16>
    tpu.vector_store %arg4[%c0_24, %c0_25, %c0_26], %79 {strides = array<i32>} : memref<1x32x128xbf16, #tpu.memory_space<vmem>>, vector<1x32x128xbf16>,
    return
  }
  func.func @transform_0(%arg0: i32) -> (i32, i32) {
    %c0_i32 = arith.constant 0 : i32
    %c0_i32_0 = arith.constant 0 : i32
    %c0_i32_1 = arith.constant 0 : i32
    return %c0_i32, %c0_i32_0 : i32, i32
  }
  func.func @transform_1(%arg0: i32) -> (i32, i32, i32) {
    %c0_i32 = arith.constant 0 : i32
    %c0_i32_0 = arith.constant 0 : i32
    %c0_i32_1 = arith.constant 0 : i32
    return %arg0, %c0_i32, %c0_i32_0 : i32, i32, i32
  }
  func.func @transform_2(%arg0: i32) -> (i32, i32, i32) {
    %c0_i32 = arith.constant 0 : i32
    %c0_i32_0 = arith.constant 0 : i32
    %c0_i32_1 = arith.constant 0 : i32
    return %arg0, %c0_i32, %c0_i32_0 : i32, i32, i32
  }
  func.func @transform_3(%arg0: i32) -> (i32, i32, i32) {
    %c0_i32 = arith.constant 0 : i32
    %c0_i32_0 = arith.constant 0 : i32
    %c0_i32_1 = arith.constant 0 : i32
    return %arg0, %c0_i32, %c0_i32_0 : i32, i32, i32
  }
}

</mosaic_0001>

<llo_original>
// kernel: gnn_vn_forward.1
$region0: #{gnn_vn_forward.1}
  #allocation0 [shape = 'u32[]', space=smem, size = 0x4, offset = 0x4, fixed_abs, tag = 'smem constant byte address 0x4 - core index']
  #allocation1 [shape = 'u32[144,128]{1,0:T(1,128)}', space=vmem, size = 0x12000, scoped, tag = 'internal scratch']
  %s0 = inlined_call_operand.vmem [shape: f32[144,32], index: 0, kind: input, shape index: {}]
  %s1 = inlined_call_operand.vmem [shape: f32[2,8,128], index: 1, kind: input, shape index: {}]
  %s2 = inlined_call_operand.vmem [shape: s8[2,128,128], index: 2, kind: input, shape index: {}]
  %s3 = inlined_call_operand.hbm [shape: bf16[2,32,128], index: 3, kind: output, shape index: {}]
  %s4 = sld [smem:[#allocation0]]
  $region45: #{gnn_vn_forward.1} parent=0
    _
  %s6 = ssub.s32 1, %s4
  %s7 = scalar_select 0, %s6, %s4
  $region1: #{gnn_vn_forward.1} parent=0
    #allocation2 [shape = 'u8[16384]{0}', space=vmem, size = 0x4000, scoped, tag = 'output window, operand 0']
    #allocation3 [shape = 's32[2]{0}', space=sflag, size = 0x8, scoped, tag = 'scoped memory for gnn_vn_forward.1']
    %8 = vsyncpa [#allocation3], 0
    %s9 = scalar_lea.sflag [#allocation3], 1
    %10 = vsyncpa %s9, 0
    loop: start=0, step=1, limit=4
    $region2: #{gnn_vn_forward.1} parent=1 // loop_pre_header
      _
    $region3: #{gnn_vn_forward.1} parent=1 // loop_header
      %s12 = sphi 0, %s16
      %p13 = scmp.ge.s32.totalorder %s12, 4
      %s20 = sphi 0, %s20
      %s22 = sphi 0, %s20
      %s23 = sphi 0, %s22
      %s37 = sphi 0, %s23
      %s43 = sphi 0, %s45
      %s46 = sphi 0, %s43
      %s47 = sphi 0, %s46
      %s63 = sphi 0, %s47
      %s69 = sphi 0, %s71
      %s72 = sphi 0, %s69
      %s73 = sphi 0, %s72
      %s89 = sphi 0, %s73
      %s95 = sphi 0, %s97
      %s98 = sphi 0, %s95
      %s99 = sphi 0, %s98
      %s115 = sphi 0, %s99
    $region4: #{gnn_vn_forward.1} parent=1 // loop_header_branch
      %15 = sbr.rel (%p13) target = $region8
    $region5: #{gnn_vn_forward.1} parent=1 // loop_body
      %s17 = ssub.s32 %s12, 1
      %s18 = ssub.s32 %s12, 2
      %s19 = sadd.s32 %s12, 1
      %s21 = sadd.s32 %s20, 1
      %p24 = scmp.eq.s32.totalorder %s12, 1
      %p25 = scmp.ne.s32.totalorder %s20, %s22
      %p26 = scmp.eq.s32.totalorder %s12, 0
      %p27 = por %p25, %p26
      %p28 = scmp.ne.s32.totalorder %s20, %s22
      %p29 = scmp.eq.s32.totalorder %s17, 1
      %p30 = por %p28, %p29
      %p31 = scmp.ne.s32.totalorder %s22, %s23
      %p32 = scmp.eq.s32.totalorder %s17, 0
      %p33 = por %p31, %p32
      %p34 = scmp.ne.s32.totalorder %s22, %s23
      %p35 = scmp.eq.s32.totalorder %s18, 1
      %p36 = por %p34, %p35
      %p38 = scmp.ne.s32.totalorder %s23, %s37
      %p39 = scmp.eq.s32.totalorder %s18, 0
      %p40 = por %p38, %p39
      %s41 = ssub.s32 %s12, %s19
      %p42 = scmp.eq.s32.totalorder %s41, 0
      %s44 = sadd.s32 %s43, 1
      %s45 = scalar_select %p42, %s43, %s44
      %p48 = pneg %p42
      %p49 = scmp.eq.s32.totalorder %s12, 1
      %p50 = por %p48, %p49
      %p51 = scmp.ne.s32.totalorder %s43, %s46
      %p52 = scmp.eq.s32.totalorder %s12, 0
      %p53 = por %p51, %p52
      %p54 = scmp.ne.s32.totalorder %s43, %s46
      %p55 = scmp.eq.s32.totalorder %s17, 1
      %p56 = por %p54, %p55
      %p57 = scmp.ne.s32.totalorder %s46, %s47
      %p58 = scmp.eq.s32.totalorder %s17, 0
      %p59 = por %p57, %p58
      %p60 = scmp.ne.s32.totalorder %s46, %s47
      %p61 = scmp.eq.s32.totalorder %s18, 1
      %p62 = por %p60, %p61
      %p64 = scmp.ne.s32.totalorder %s47, %s63
      %p65 = scmp.eq.s32.totalorder %s18, 0
      %p66 = por %p64, %p65
      %s67 = ssub.s32 %s12, %s19
      %p68 = scmp.eq.s32.totalorder %s67, 0
      %s70 = sadd.s32 %s69, 1
      %s71 = scalar_select %p68, %s69, %s70
      %p74 = pneg %p68
      %p75 = scmp.eq.s32.totalorder %s12, 1
      %p76 = por %p74, %p75
      %p77 = scmp.ne.s32.totalorder %s69, %s72
      %p78 = scmp.eq.s32.totalorder %s12, 0
      %p79 = por %p77, %p78
      %p80 = scmp.ne.s32.totalorder %s69, %s72
      %p81 = scmp.eq.s32.totalorder %s17, 1
      %p82 = por %p80, %p81
      %p83 = scmp.ne.s32.totalorder %s72, %s73
      %p84 = scmp.eq.s32.totalorder %s17, 0
      %p85 = por %p83, %p84
      %p86 = scmp.ne.s32.totalorder %s72, %s73
      %p87 = scmp.eq.s32.totalorder %s18, 1
      %p88 = por %p86, %p87
      %p90 = scmp.ne.s32.totalorder %s73, %s89
      %p91 = scmp.eq.s32.totalorder %s18, 0
      %p92 = por %p90, %p91
      %s93 = ssub.s32 %s12, %s19
      %p94 = scmp.eq.s32.totalorder %s93, 0
      %s96 = sadd.s32 %s95, 1
      %s97 = scalar_select %p94, %s95, %s96
      %p100 = pneg %p94
      %p101 = scmp.eq.s32.totalorder %s12, 1
      %p102 = por %p100, %p101
      %p103 = scmp.ne.s32.totalorder %s95, %s98
      %p104 = scmp.eq.s32.totalorder %s12, 0
      %p105 = por %p103, %p104
      %p106 = scmp.ne.s32.totalorder %s95, %s98
      %p107 = scmp.eq.s32.totalorder %s17, 1
      %p108 = por %p106, %p107
      %p109 = scmp.ne.s32.totalorder %s98, %s99
      %p110 = scmp.eq.s32.totalorder %s17, 0
      %p111 = por %p109, %p110
      %p112 = scmp.ne.s32.totalorder %s98, %s99
      %p113 = scmp.eq.s32.totalorder %s18, 1
      %p114 = por %p112, %p113
      %p116 = scmp.ne.s32.totalorder %s99, %s115
      %p117 = scmp.eq.s32.totalorder %s18, 0
      %p118 = por %p116, %p117
      %p119 = scmp.le.s32.totalorder 1, %s12
      %p120 = scmp.lt.s32.totalorder %s12, 3
      %p121 = pnand %p119, %p120
      %p122 = pneg %p121
      // Predicated region
      $region9: #{gnn_vn_forward.1} parent=5 // pred_check
        _
      $region10: #{gnn_vn_forward.1} parent=5 // pred_check_branch
        %124 = sbr.rel (%p121) target = $region12
      $region11: #{gnn_vn_forward.1} parent=5 // pred_region
        %s125 = ssub.s32 %s12, 1
        // Predicated region
        $region13: #{gnn_vn_forward.1} parent=11 // pred_check
          %p126 = pneg %p33
        $region14: #{gnn_vn_forward.1} parent=11 // pred_check_branch
          %128 = sbr.rel (%p126) target = $region16
        $region15: #{gnn_vn_forward.1} parent=11 // pred_region
          _
        $region16: #{gnn_vn_forward.1} parent=11 // pred_fallthru
          _
      $region12: #{gnn_vn_forward.1} parent=5 // pred_fallthru
        _
      %p129 = scmp.lt.s32.totalorder %s12, 2
      // Predicated region
      $region17: #{gnn_vn_forward.1} parent=5 // pred_check
        %p130 = pneg %p129
      $region18: #{gnn_vn_forward.1} parent=5 // pred_check_branch
        %132 = sbr.rel (%p130) target = $region20
      $region19: #{gnn_vn_forward.1} parent=5 // pred_region
        // Predicated region
        $region21: #{gnn_vn_forward.1} parent=19 // pred_check
          %p133 = pneg %p53
        $region22: #{gnn_vn_forward.1} parent=19 // pred_check_branch
          %135 = sbr.rel (%p133) target = $region24
        $region23: #{gnn_vn_forward.1} parent=19 // pred_region
          %p136 = scmp.lt.s32.totalorder %s12, 1
          %s137 = scalar_select %p136, %s12, 1
          %s138 = smul.addr %s137, 8
          %s139 = scalar_lea.vmem %s1, %s138
        $region24: #{gnn_vn_forward.1} parent=19 // pred_fallthru
          _
        // Predicated region
        $region25: #{gnn_vn_forward.1} parent=19 // pred_check
          %p140 = pneg %p79
        $region26: #{gnn_vn_forward.1} parent=19 // pred_check_branch
          %142 = sbr.rel (%p140) target = $region28
        $region27: #{gnn_vn_forward.1} parent=19 // pred_region
          %p143 = scmp.lt.s32.totalorder %s12, 1
          %s144 = scalar_select %p143, %s12, 1
          %s145 = smul.addr %s144, 4
          %s146 = smul.addr %s145, 8
          %s147 = scalar_lea.vmem %s2, %s146
        $region28: #{gnn_vn_forward.1} parent=19 // pred_fallthru
          _
      $region20: #{gnn_vn_forward.1} parent=5 // pred_fallthru
        _
      %p148 = scmp.le.s32.totalorder 1, %s12
      %p149 = scmp.lt.s32.totalorder %s12, 3
      %p150 = pnand %p148, %p149
      %p151 = pneg %p150
      // Predicated region
      $region29: #{gnn_vn_forward.1} parent=5 // pred_check
        _
      $region30: #{gnn_vn_forward.1} parent=5 // pred_check_branch
        %153 = sbr.rel (%p150) target = $region32
      $region31: #{gnn_vn_forward.1} parent=5 // pred_region
        %s154 = ssub.s32 %s12, 1
        %p155 = pneg %p33
        %p156 = pneg %p30
        %p157 = scmp.lt.s32.totalorder %s17, 1
        %s158 = scalar_select %p157, %s17, 1
        %s159 = smul.addr %s158, 8
        %s160 = scalar_lea.vmem %s1, %s159
        %p161 = pneg %p59
        %p162 = pneg %p56
        %p163 = scmp.lt.s32.totalorder %s17, 1
        %s164 = scalar_select %p163, %s17, 1
        %s165 = smul.addr %s164, 4
        %s166 = smul.addr %s165, 8
        %s167 = scalar_lea.vmem %s2, %s166
        %p168 = pneg %p85
        %p169 = pneg %p82
        %p170 = pneg %p111
        %p171 = pneg %p108
        %s172 = sand.u32 %s98, 1
        %s173 = scalar_lea.sflag [#allocation3], %s172
        %s174 = sand.u32 %s98, 1
        %s175 = smul.addr %s174, 16
        %s176 = scalar_lea.vmem [#allocation2], %s175
        %p177 = scmp.lt.s32.totalorder %s17, 1
        %s178 = scalar_select %p177, %s17, 1
        %s179 = smul.addr %s178, 8
        %s180 = scalar_lea.vmem %s1, %s179
        %p181 = scmp.lt.s32.totalorder %s17, 1
        %s182 = scalar_select %p181, %s17, 1
        %s183 = smul.addr %s182, 4
        %s184 = smul.addr %s183, 8
        %s185 = scalar_lea.vmem %s2, %s184
        %v189 = vld [vmem:[%s0] sm:$0xff]
        %v190 = vld [vmem:[%s0 + $0x8] sm:$0xff]
        %v191 = vld [vmem:[%s0 + $0x10] sm:$0xff]
        %v192 = vld [vmem:[%s0 + $0x18] sm:$0xff]
        %v193 = vld [vmem:[%s0 + $0x20] sm:$0x3]
        %v194 = vld [vmem:[%s0 + $0x28] sm:$0xff]
        %v195 = vld [vmem:[%s0 + $0x30] sm:$0xff]
        %v196 = vld [vmem:[%s0 + $0x38] sm:$0xff]
        %v197 = vld [vmem:[%s0 + $0x40] sm:$0xff]
        %v198 = vld [vmem:[%s0 + $0x48] sm:$0x3]
        %v199 = vld [vmem:[%s0 + $0x50] sm:$0xff]
        %v200 = vld [vmem:[%s0 + $0x58] sm:$0xff]
        %v201 = vld [vmem:[%s0 + $0x60] sm:$0xff]
        %v202 = vld [vmem:[%s0 + $0x68] sm:$0xff]
        %v203 = vld [vmem:[%s0 + $0x70] sm:$0xff]
        %v204 = vld [vmem:[%s0 + $0x78] sm:$0xff]
        %v205 = vld [vmem:[%s0 + $0x80] sm:$0xff]
        %v206 = vld [vmem:[%s0 + $0x88] sm:$0xff]
        %v207 = vld [vmem:[%s180] sm:$0xff]
        %v208 = vld [vmem:[%s185] sm:$0xff]
        %v209 = vld [vmem:[%s185 + $0x8] sm:$0xff]
        %v210 = vld [vmem:[%s185 + $0x10] sm:$0xff]
        %v211 = vld [vmem:[%s185 + $0x18] sm:$0xff]
        %v212 = vpack.c.bf16 %v190, %v189
        %v213 = vpack.c.bf16 %v192, %v191
        %v214 = vpack.c.bf16 %v193, %v193
        %v215 = vpack.c.bf16 %v207, %v207
        %vm216 = vcmask 64512
        %v218 = vsel %vm216, %v212, 0
        %v221 = vsel %vm216, %v213, 0
        %v224 = vsel %vm216, %v214, 0
        %vm226 = vcmask 1043456
        %v228 = vsel %vm226, %v215, 0
        %230 = vmatprep.subr.bf16.mxu0 0
        %231 = vmatpush1.bf16.msra.mxu0 %v228
        %232 = vmatprep.subr.bf16.mxu0 0
        %233 = vmatpush1.bf16.msra.mxu0 0
        %234 = vmatprep.subr.bf16.mxu0 0
        %235 = vmatpush1.bf16.msra.mxu0 0
        %236 = vmatprep.subr.bf16.mxu0 0
        %237 = vmatpush1.bf16.msra.mxu0 0
        %238 = vmatprep.subr.bf16.mxu0 0
        %239 = vmatpush1.bf16.msra.mxu0 0
        %240 = vmatprep.subr.bf16.mxu0 0
        %241 = vmatpush1.bf16.msra.mxu0 0
        %242 = vmatprep.subr.bf16.mxu0 0
        %243 = vmatpush1.bf16.msra.mxu0 0
        %244 = vmatprep.subr.bf16.mxu0 0
        %245 = vmatpush1.bf16.msra.mxu0 0
        %246 = vmatprep.subr.bf16.mxu0 0
        %247 = vmatpush1.bf16.msra.mxu0 0
        %248 = vmatprep.subr.bf16.mxu0 0
        %249 = vmatpush1.bf16.msra.mxu0 0
        %250 = vmatprep.subr.bf16.mxu0 0
        %251 = vmatpush1.bf16.msra.mxu0 0
        %252 = vmatprep.subr.bf16.mxu0 0
        %253 = vmatpush1.bf16.msra.mxu0 0
        %254 = vmatprep.subr.bf16.mxu0 0
        %255 = vmatpush1.bf16.msra.mxu0 0
        %256 = vmatprep.subr.bf16.mxu0 0
        %257 = vmatpush1.bf16.msra.mxu0 0
        %258 = vmatprep.subr.bf16.mxu0 0
        %259 = vmatpush1.bf16.msra.mxu0 0
        %260 = vmatprep.subr.bf16.mxu0 0
        %261 = vmatpush1.bf16.msra.mxu0 0
        %262 = vmatprep.mubr.bf16.mxu0 0
        %263 = vmatmul.mubr.bf16.gmra.mrb[0].mxu0 %v218
        %v264 = vpop.f32.mrb[0].mxu0
        %v265 = vadd.f32 0.0, %v264
        %v266 = vpop.f32.mrb[0].mxu0
        %v267 = vpop.f32.mrb[0].mxu0
        %v268 = vadd.f32 0.0, %v267
        %v269 = vpop.f32.mrb[0].mxu0
        %270 = vmatprep.mubr.bf16.mxu0 0
        %271 = vmatmul.mubr.bf16.gmra.mrb[0].mxu0 %v221
        %v272 = vpop.f32.mrb[0].mxu0
        %v273 = vadd.f32 0.0, %v272
        %v274 = vpop.f32.mrb[0].mxu0
        %v275 = vpop.f32.mrb[0].mxu0
        %v276 = vadd.f32 0.0, %v275
        %v277 = vpop.f32.mrb[0].mxu0
        %278 = vmatprep.mubr.bf16.mxu0 0
        %279 = vmatmul.mubr.bf16.gmra.mrb[0].mxu0 %v224
        %v280 = vpop.f32.mrb[0].mxu0
        %v281 = vadd.f32 0.0, %v280
        %v282 = vpop.f32.mrb[0].mxu0
        %v283 = vpop.f32.mrb[0].mxu0
        %v284 = vpop.f32.mrb[0].mxu0
        %285 = vdwg.mxu0
        %vm286 = vnez %v208
        %vm287 = vnez %v209
        %vm288 = vnez %v210
        %vm289 = vnez %v211
        %290 = vxpose.xlu0.b32.start [1/16] %v281, 128
        %291 = vxpose.xlu0.b32.cont [2/16] 0.0, 128
        %292 = vxpose.xlu0.b32.cont [3/16] 0.0, 128
        %293 = vxpose.xlu0.b32.cont [4/16] 0.0, 128
        %294 = vxpose.xlu0.b32.cont [5/16] 0.0, 128
        %295 = vxpose.xlu0.b32.cont [6/16] 0.0, 128
        %296 = vxpose.xlu0.b32.cont [7/16] 0.0, 128
        %297 = vxpose.xlu0.b32.cont [8/16] 0.0, 128
        %298 = vxpose.xlu0.b32.cont [9/16] 0.0, 128
        %299 = vxpose.xlu0.b32.cont [10/16] 0.0, 128
        %300 = vxpose.xlu0.b32.cont [11/16] 0.0, 128
        %301 = vxpose.xlu0.b32.cont [12/16] 0.0, 128
        %302 = vxpose.xlu0.b32.cont [13/16] 0.0, 128
        %303 = vxpose.xlu0.b32.cont [14/16] 0.0, 128
        %304 = vxpose.xlu0.b32.cont [15/16] 0.0, 128
        %305 = vxpose.xlu0.b32.end [16/16] 0.0, 128
        %v306 = vpop.trf.xlu0
        %v307 = vpop.trf.xlu0
        %v308 = vpop.trf.xlu0
        %v309 = vpop.trf.xlu0
        %v310 = vpop.trf.xlu0
        %v311 = vpop.trf.xlu0
        %v312 = vpop.trf.xlu0
        %v313 = vpop.trf.xlu0
        %v314 = vpop.trf.xlu0
        %v315 = vpop.trf.xlu0
        %v316 = vpop.trf.xlu0
        %v317 = vpop.trf.xlu0
        %v318 = vpop.trf.xlu0
        %v319 = vpop.trf.xlu0
        %v320 = vpop.trf.xlu0
        %v321 = vpop.trf.xlu0
        %v322 = vlaneseq
        %v323 = vshrl.u32 %v322, 7
        %v324 = vsub.s32 1, %v323
        %v325 = vrot.slane %v281, %v324
        %327 = vset.pattern.permute.xlu0 0
        %328 = vperm.xlu0 %327, %v306
        %v329 = vpop.permute.xlu0 %328
        %332 = vset.pattern.permute.xlu0 0
        %333 = vperm.xlu0 %332, %v307
        %v334 = vpop.permute.xlu0 %333
        %337 = vset.pattern.permute.xlu0 0
        %338 = vperm.xlu0 %337, %v308
        %v339 = vpop.permute.xlu0 %338
        %342 = vset.pattern.permute.xlu0 0
        %343 = vperm.xlu0 %342, %v309
        %v344 = vpop.permute.xlu0 %343
        %347 = vset.pattern.permute.xlu0 0
        %348 = vperm.xlu0 %347, %v310
        %v349 = vpop.permute.xlu0 %348
        %352 = vset.pattern.permute.xlu0 0
        %353 = vperm.xlu0 %352, %v311
        %v354 = vpop.permute.xlu0 %353
        %357 = vset.pattern.permute.xlu0 0
        %358 = vperm.xlu0 %357, %v312
        %v359 = vpop.permute.xlu0 %358
        %362 = vset.pattern.permute.xlu0 0
        %363 = vperm.xlu0 %362, %v313
        %v364 = vpop.permute.xlu0 %363
        %367 = vset.pattern.permute.xlu0 0
        %368 = vperm.xlu0 %367, %v314
        %v369 = vpop.permute.xlu0 %368
        %372 = vset.pattern.permute.xlu0 0
        %373 = vperm.xlu0 %372, %v315
        %v374 = vpop.permute.xlu0 %373
        %377 = vset.pattern.permute.xlu0 0
        %378 = vperm.xlu0 %377, %v316
        %v379 = vpop.permute.xlu0 %378
        %382 = vset.pattern.permute.xlu0 0
        %383 = vperm.xlu0 %382, %v317
        %v384 = vpop.permute.xlu0 %383
        %387 = vset.pattern.permute.xlu0 0
        %388 = vperm.xlu0 %387, %v318
        %v389 = vpop.permute.xlu0 %388
        %392 = vset.pattern.permute.xlu0 0
        %393 = vperm.xlu0 %392, %v319
        %v394 = vpop.permute.xlu0 %393
        %397 = vset.pattern.permute.xlu0 0
        %398 = vperm.xlu0 %397, %v320
        %v399 = vpop.permute.xlu0 %398
        %402 = vset.pattern.permute.xlu0 0
        %403 = vperm.xlu0 %402, %v321
        %v404 = vpop.permute.xlu0 %403
        %v406 = vadd.f32 %v325, %v329
        %v407 = vadd.f32 %v325, %v334
        %v408 = vadd.f32 %v325, %v339
        %v409 = vadd.f32 %v325, %v344
        %v410 = vadd.f32 %v325, %v349
        %v411 = vadd.f32 %v325, %v354
        %v412 = vadd.f32 %v325, %v359
        %v413 = vadd.f32 %v325, %v364
        %v414 = vadd.f32 %v325, %v369
        %v415 = vadd.f32 %v325, %v374
        %v416 = vadd.f32 %v325, %v379
        %v417 = vadd.f32 %v325, %v384
        %v418 = vadd.f32 %v325, %v389
        %v419 = vadd.f32 %v325, %v394
        %v420 = vadd.f32 %v325, %v399
        %v421 = vadd.f32 %v325, %v404
        %vm422 = vcmp.gt.f32.partialorder %v406, 0.0
        %vm423 = vcmp.gt.f32.partialorder %v407, 0.0
        %vm424 = vcmp.gt.f32.partialorder %v408, 0.0
        %vm425 = vcmp.gt.f32.partialorder %v409, 0.0
        %vm426 = vcmp.gt.f32.partialorder %v410, 0.0
        %vm427 = vcmp.gt.f32.partialorder %v411, 0.0
        %vm428 = vcmp.gt.f32.partialorder %v412, 0.0
        %vm429 = vcmp.gt.f32.partialorder %v413, 0.0
        %vm430 = vcmp.gt.f32.partialorder %v414, 0.0
        %vm431 = vcmp.gt.f32.partialorder %v415, 0.0
        %vm432 = vcmp.gt.f32.partialorder %v416, 0.0
        %vm433 = vcmp.gt.f32.partialorder %v417, 0.0
        %vm434 = vcmp.gt.f32.partialorder %v418, 0.0
        %vm435 = vcmp.gt.f32.partialorder %v419, 0.0
        %vm436 = vcmp.gt.f32.partialorder %v420, 0.0
        %vm437 = vcmp.gt.f32.partialorder %v421, 0.0
        %v438 = vmul.f32 %v406, 0.2
        %v439 = vmul.f32 %v407, 0.2
        %v440 = vmul.f32 %v408, 0.2
        %v441 = vmul.f32 %v409, 0.2
        %v442 = vmul.f32 %v410, 0.2
        %v443 = vmul.f32 %v411, 0.2
        %v444 = vmul.f32 %v412, 0.2
        %v445 = vmul.f32 %v413, 0.2
        %v446 = vmul.f32 %v414, 0.2
        %v447 = vmul.f32 %v415, 0.2
        %v448 = vmul.f32 %v416, 0.2
        %v449 = vmul.f32 %v417, 0.2
        %v450 = vmul.f32 %v418, 0.2
        %v451 = vmul.f32 %v419, 0.2
        %v452 = vmul.f32 %v420, 0.2
        %v453 = vmul.f32 %v421, 0.2
        %v454 = vsel %vm422, %v406, %v438
        %v455 = vsel %vm423, %v407, %v439
        %v456 = vsel %vm424, %v408, %v440
        %v457 = vsel %vm425, %v409, %v441
        %v458 = vsel %vm426, %v410, %v442
        %v459 = vsel %vm427, %v411, %v443
        %v460 = vsel %vm428, %v412, %v444
        %v461 = vsel %vm429, %v413, %v445
        %v462 = vsel %vm430, %v414, %v446
        %v463 = vsel %vm431, %v415, %v447
        %v464 = vsel %vm432, %v416, %v448
        %v465 = vsel %vm433, %v417, %v449
        %v466 = vsel %vm434, %v418, %v450
        %v467 = vsel %vm435, %v419, %v451
        %v468 = vsel %vm436, %v420, %v452
        %v469 = vsel %vm437, %v421, %v453
        %v470 = vsel %vm286, 16843009, 0
        %v471 = vsel %vm287, 16843009, 0
        %v472 = vsel %vm288, 16843009, 0
        %v473 = vsel %vm289, 16843009, 0
        %v474 = vunpack.c.0.s8 %v470
        %v475 = vunpack.c.1.s8 %v470
        %v476 = vunpack.c.2.s8 %v470
        %v477 = vunpack.c.3.s8 %v470
        %v478 = vunpack.c.0.s8 %v471
        %v479 = vunpack.c.1.s8 %v471
        %v480 = vunpack.c.2.s8 %v471
        %v481 = vunpack.c.3.s8 %v471
        %v482 = vunpack.c.0.s8 %v472
        %v483 = vunpack.c.1.s8 %v472
        %v484 = vunpack.c.2.s8 %v472
        %v485 = vunpack.c.3.s8 %v472
        %v486 = vunpack.c.0.s8 %v473
        %v487 = vunpack.c.1.s8 %v473
        %v488 = vunpack.c.2.s8 %v473
        %v489 = vunpack.c.3.s8 %v473
        %v490 = vpack.c.b16 %v474, %v474
        %v491 = vpack.c.b8 %v490, %v490
        %v492 = vpack.c.b16 %v475, %v475
        %v493 = vpack.c.b8 %v492, %v492
        %v494 = vpack.c.b16 %v476, %v476
        %v495 = vpack.c.b8 %v494, %v494
        %v496 = vpack.c.b16 %v477, %v477
        %v497 = vpack.c.b8 %v496, %v496
        %v498 = vpack.c.b16 %v478, %v478
        %v499 = vpack.c.b8 %v498, %v498
        %v500 = vpack.c.b16 %v479, %v479
        %v501 = vpack.c.b8 %v500, %v500
        %v502 = vpack.c.b16 %v480, %v480
        %v503 = vpack.c.b8 %v502, %v502
        %v504 = vpack.c.b16 %v481, %v481
        %v505 = vpack.c.b8 %v504, %v504
        %v506 = vpack.c.b16 %v482, %v482
        %v507 = vpack.c.b8 %v506, %v506
        %v508 = vpack.c.b16 %v483, %v483
        %v509 = vpack.c.b8 %v508, %v508
        %v510 = vpack.c.b16 %v484, %v484
        %v511 = vpack.c.b8 %v510, %v510
        %v512 = vpack.c.b16 %v485, %v485
        %v513 = vpack.c.b8 %v512, %v512
        %v514 = vpack.c.b16 %v486, %v486
        %v515 = vpack.c.b8 %v514, %v514
        %v516 = vpack.c.b16 %v487, %v487
        %v517 = vpack.c.b8 %v516, %v516
        %v518 = vpack.c.b16 %v488, %v488
        %v519 = vpack.c.b8 %v518, %v518
        %v520 = vpack.c.b16 %v489, %v489
        %v521 = vpack.c.b8 %v520, %v520
        %vm522 = vnez %v491
        %vm523 = vnez %v493
        %vm524 = vnez %v495
        %vm525 = vnez %v497
        %vm526 = vnez %v499
        %vm527 = vnez %v501
        %vm528 = vnez %v503
        %vm529 = vnez %v505
        %vm530 = vnez %v507
        %vm531 = vnez %v509
        %vm532 = vnez %v511
        %vm533 = vnez %v513
        %vm534 = vnez %v515
        %vm535 = vnez %v517
        %vm536 = vnez %v519
        %vm537 = vnez %v521
        %v538 = vsel %vm522, 16843009, 0
        %v539 = vsel %vm523, 16843009, 0
        %v540 = vsel %vm524, 16843009, 0
        %v541 = vsel %vm525, 16843009, 0
        %v542 = vsel %vm526, 16843009, 0
        %v543 = vsel %vm527, 16843009, 0
        %v544 = vsel %vm528, 16843009, 0
        %v545 = vsel %vm529, 16843009, 0
        %v546 = vsel %vm530, 16843009, 0
        %v547 = vsel %vm531, 16843009, 0
        %v548 = vsel %vm532, 16843009, 0
        %v549 = vsel %vm533, 16843009, 0
        %v550 = vsel %vm534, 16843009, 0
        %v551 = vsel %vm535, 16843009, 0
        %v552 = vsel %vm536, 16843009, 0
        %v553 = vsel %vm537, 16843009, 0
        %v554 = vunpack.c.0.s8 %v538
        %v555 = vunpack.c.0.s8 %v539
        %v556 = vunpack.c.0.s8 %v540
        %v557 = vunpack.c.0.s8 %v541
        %v558 = vunpack.c.0.s8 %v542
        %v559 = vunpack.c.0.s8 %v543
        %v560 = vunpack.c.0.s8 %v544
        %v561 = vunpack.c.0.s8 %v545
        %v562 = vunpack.c.0.s8 %v546
        %v563 = vunpack.c.0.s8 %v547
        %v564 = vunpack.c.0.s8 %v548
        %v565 = vunpack.c.0.s8 %v549
        %v566 = vunpack.c.0.s8 %v550
        %v567 = vunpack.c.0.s8 %v551
        %v568 = vunpack.c.0.s8 %v552
        %v569 = vunpack.c.0.s8 %v553
        %vm570 = vcmp.ne.s32.totalorder %v554, 0
        %vm571 = vcmp.ne.s32.totalorder %v555, 0
        %vm572 = vcmp.ne.s32.totalorder %v556, 0
        %vm573 = vcmp.ne.s32.totalorder %v557, 0
        %vm574 = vcmp.ne.s32.totalorder %v558, 0
        %vm575 = vcmp.ne.s32.totalorder %v559, 0
        %vm576 = vcmp.ne.s32.totalorder %v560, 0
        %vm577 = vcmp.ne.s32.totalorder %v561, 0
        %vm578 = vcmp.ne.s32.totalorder %v562, 0
        %vm579 = vcmp.ne.s32.totalorder %v563, 0
        %vm580 = vcmp.ne.s32.totalorder %v564, 0
        %vm581 = vcmp.ne.s32.totalorder %v565, 0
        %vm582 = vcmp.ne.s32.totalorder %v566, 0
        %vm583 = vcmp.ne.s32.totalorder %v567, 0
        %vm584 = vcmp.ne.s32.totalorder %v568, 0
        %vm585 = vcmp.ne.s32.totalorder %v569, 0
        %v586 = vsel %vm570, %v454, -1e+30
        %v587 = vsel %vm571, %v455, -1e+30
        %v588 = vsel %vm572, %v456, -1e+30
        %v589 = vsel %vm573, %v457, -1e+30
        %v590 = vsel %vm574, %v458, -1e+30
        %v591 = vsel %vm575, %v459, -1e+30
        %v592 = vsel %vm576, %v460, -1e+30
        %v593 = vsel %vm577, %v461, -1e+30
        %v594 = vsel %vm578, %v462, -1e+30
        %v595 = vsel %vm579, %v463, -1e+30
        %v596 = vsel %vm580, %v464, -1e+30
        %v597 = vsel %vm581, %v465, -1e+30
        %v598 = vsel %vm582, %v466, -1e+30
        %v599 = vsel %vm583, %v467, -1e+30
        %v600 = vsel %vm584, %v468, -1e+30
        %v601 = vsel %vm585, %v469, -1e+30
        %v602 = vmax.f32 %v586, %v590
        %v603 = vmax.f32 %v587, %v591
        %v604 = vmax.f32 %v588, %v592
        %v605 = vmax.f32 %v589, %v593
        %v606 = vmax.f32 %v602, %v594
        %v607 = vmax.f32 %v603, %v595
        %v608 = vmax.f32 %v604, %v596
        %v609 = vmax.f32 %v605, %v597
        %v610 = vmax.f32 %v606, %v598
        %v611 = vmax.f32 %v607, %v599
        %v612 = vmax.f32 %v608, %v600
        %v613 = vmax.f32 %v609, %v601
        %v614 = vmax.f32 %v610, %v611
        %v615 = vmax.f32 %v612, %v613
        %v616 = vmax.f32 %v614, %v615
        %v617 = vrot.slane %v616, 4
        %v618 = vmax.f32 %v616, %v617
        %v619 = vrot.slane %v618, 2
        %v620 = vmax.f32 %v618, %v619
        %v621 = vrot.slane %v620, 1
        %v622 = vmax.f32 %v620, %v621
        %v623 = vsub.f32 %v586, %v622
        %v624 = vsub.f32 %v587, %v622
        %v625 = vsub.f32 %v588, %v622
        %v626 = vsub.f32 %v589, %v622
        %v627 = vsub.f32 %v590, %v622
        %v628 = vsub.f32 %v591, %v622
        %v629 = vsub.f32 %v592, %v622
        %v630 = vsub.f32 %v593, %v622
        %v631 = vsub.f32 %v594, %v622
        %v632 = vsub.f32 %v595, %v622
        %v633 = vsub.f32 %v596, %v622
        %v634 = vsub.f32 %v597, %v622
        %v635 = vsub.f32 %v598, %v622
        %v636 = vsub.f32 %v599, %v622
        %v637 = vsub.f32 %v600, %v622
        %v638 = vsub.f32 %v601, %v622
        %v639 = vmul.f32 %v623, 1.442695
        %v640 = vpow.pop %v639
        %v641 = vmul.f32 %v624, 1.442695
        %v642 = vpow.pop %v641
        %v643 = vmul.f32 %v625, 1.442695
        %v644 = vpow.pop %v643
        %v645 = vmul.f32 %v626, 1.442695
        %v646 = vpow.pop %v645
        %v647 = vmul.f32 %v627, 1.442695
        %v648 = vpow.pop %v647
        %v649 = vmul.f32 %v628, 1.442695
        %v650 = vpow.pop %v649
        %v651 = vmul.f32 %v629, 1.442695
        %v652 = vpow.pop %v651
        %v653 = vmul.f32 %v630, 1.442695
        %v654 = vpow.pop %v653
        %v655 = vmul.f32 %v631, 1.442695
        %v656 = vpow.pop %v655
        %v657 = vmul.f32 %v632, 1.442695
        %v658 = vpow.pop %v657
        %v659 = vmul.f32 %v633, 1.442695
        %v660 = vpow.pop %v659
        %v661 = vmul.f32 %v634, 1.442695
        %v662 = vpow.pop %v661
        %v663 = vmul.f32 %v635, 1.442695
        %v664 = vpow.pop %v663
        %v665 = vmul.f32 %v636, 1.442695
        %v666 = vpow.pop %v665
        %v667 = vmul.f32 %v637, 1.442695
        %v668 = vpow.pop %v667
        %v669 = vmul.f32 %v638, 1.442695
        %v670 = vpow.pop %v669
        %v671 = vadd.f32 %v640, %v642
        %v672 = vadd.f32 %v671, %v644
        %v673 = vadd.f32 %v672, %v646
        %v674 = vadd.f32 %v673, %v648
        %v675 = vadd.f32 %v674, %v650
        %v676 = vadd.f32 %v675, %v652
        %v677 = vadd.f32 %v676, %v654
        %v678 = vadd.f32 %v677, %v656
        %v679 = vadd.f32 %v678, %v658
        %v680 = vadd.f32 %v679, %v660
        %v681 = vadd.f32 %v680, %v662
        %v682 = vadd.f32 %v681, %v664
        %v683 = vadd.f32 %v682, %v666
        %v684 = vadd.f32 %v683, %v668
        %v685 = vadd.f32 %v684, %v670
        %v686 = vrot.slane %v685, 4
        %v687 = vadd.f32 %v685, %v686
        %v688 = vrot.slane %v687, 2
        %v689 = vadd.f32 %v687, %v688
        %v690 = vrot.slane %v689, 1
        %v691 = vadd.f32 %v689, %v690
        %v692 = vrcp.pop %v691
        %v693 = vmul.f32 %v640, %v692
        %v694 = vmul.f32 %v642, %v692
        %v695 = vmul.f32 %v644, %v692
        %v696 = vmul.f32 %v646, %v692
        %v697 = vmul.f32 %v648, %v692
        %v698 = vmul.f32 %v650, %v692
        %v699 = vmul.f32 %v652, %v692
        %v700 = vmul.f32 %v654, %v692
        %v701 = vmul.f32 %v656, %v692
        %v702 = vmul.f32 %v658, %v692
        %v703 = vmul.f32 %v660, %v692
        %v704 = vmul.f32 %v662, %v692
        %v705 = vmul.f32 %v664, %v692
        %v706 = vmul.f32 %v666, %v692
        %v707 = vmul.f32 %v668, %v692
        %v708 = vmul.f32 %v670, %v692
        %v709 = vpack.c.bf16 %v268, %v265
        %v710 = vpack.c.bf16 %v276, %v273
        %v711 = vpack.c.bf16 %v694, %v693
        %v712 = vpack.c.bf16 %v696, %v695
        %v713 = vpack.c.bf16 %v698, %v697
        %v714 = vpack.c.bf16 %v700, %v699
        %v715 = vpack.c.bf16 %v702, %v701
        %v716 = vpack.c.bf16 %v704, %v703
        %v717 = vpack.c.bf16 %v706, %v705
        %v718 = vpack.c.bf16 %v708, %v707
        %720 = vset.pattern.permute.xlu0 0
        %721 = vperm.xlu0 %720, %v199
        %v722 = vpop.permute.xlu0 %721
        %725 = vset.pattern.permute.xlu0 0
        %726 = vperm.xlu0 %725, %v200
        %v727 = vpop.permute.xlu0 %726
        %730 = vset.pattern.permute.xlu0 0
        %731 = vperm.xlu0 %730, %v201
        %v732 = vpop.permute.xlu0 %731
        %735 = vset.pattern.permute.xlu0 0
        %736 = vperm.xlu0 %735, %v202
        %v737 = vpop.permute.xlu0 %736
        %739 = vmatprep.subr.bf16.mxu0 0
        %740 = vmatpush1.bf16.msra.mxu0 %v711
        %741 = vmatprep.subr.bf16.mxu0 0
        %742 = vmatpush1.bf16.msra.mxu0 %v712
        %743 = vmatprep.subr.bf16.mxu0 0
        %744 = vmatpush1.bf16.msra.mxu0 %v713
        %745 = vmatprep.subr.bf16.mxu0 0
        %746 = vmatpush1.bf16.msra.mxu0 %v714
        %747 = vmatprep.subr.bf16.mxu0 0
        %748 = vmatpush1.bf16.msra.mxu0 %v715
        %749 = vmatprep.subr.bf16.mxu0 0
        %750 = vmatpush1.bf16.msra.mxu0 %v716
        %751 = vmatprep.subr.bf16.mxu0 0
        %752 = vmatpush1.bf16.msra.mxu0 %v717
        %753 = vmatprep.subr.bf16.mxu0 0
        %754 = vmatpush1.bf16.msra.mxu0 %v718
        %755 = vmatprep.subr.bf16.mxu0 0
        %756 = vmatpush1.bf16.msra.mxu0 0
        %757 = vmatprep.subr.bf16.mxu0 0
        %758 = vmatpush1.bf16.msra.mxu0 0
        %759 = vmatprep.subr.bf16.mxu0 0
        %760 = vmatpush1.bf16.msra.mxu0 0
        %761 = vmatprep.subr.bf16.mxu0 0
        %762 = vmatpush1.bf16.msra.mxu0 0
        %763 = vmatprep.subr.bf16.mxu0 0
        %764 = vmatpush1.bf16.msra.mxu0 0
        %765 = vmatprep.subr.bf16.mxu0 0
        %766 = vmatpush1.bf16.msra.mxu0 0
        %767 = vmatprep.subr.bf16.mxu0 0
        %768 = vmatpush1.bf16.msra.mxu0 0
        %769 = vmatprep.subr.bf16.mxu0 0
        %770 = vmatpush1.bf16.msra.mxu0 0
        %771 = vmatprep.mubr.bf16.mxu0 0
        %772 = vmatmul.mubr.bf16.gmra.mrb[0].mxu0 %v709
        %v773 = vpop.f32.mrb[0].mxu0
        %v774 = vadd.f32 %v722, %v773
        %v775 = vpop.f32.mrb[0].mxu0
        %v776 = vpop.f32.mrb[0].mxu0
        %v777 = vadd.f32 %v727, %v776
        %v778 = vpop.f32.mrb[0].mxu0
        %779 = vmatprep.mubr.bf16.mxu0 0
        %780 = vmatmul.mubr.bf16.gmra.mrb[0].mxu0 %v710
        %v781 = vpop.f32.mrb[0].mxu0
        %v782 = vadd.f32 %v732, %v781
        %v783 = vpop.f32.mrb[0].mxu0
        %v784 = vpop.f32.mrb[0].mxu0
        %v785 = vadd.f32 %v737, %v784
        %v786 = vpop.f32.mrb[0].mxu0
        %787 = vdwg.mxu0
        %v788 = vpack.c.bf16 %v195, %v194
        %v789 = vpack.c.bf16 %v197, %v196
        %v790 = vpack.c.bf16 %v198, %v198
        %v791 = vpack.c.bf16 %v777, %v774
        %v792 = vpack.c.bf16 %v785, %v782
        %vm793 = vcmask 261120
        %v795 = vsel %vm793, %v788, 0
        %v798 = vsel %vm793, %v789, 0
        %v801 = vsel %vm793, %v790, 0
        %803 = vmatprep.subr.bf16.mxu0 0
        %804 = vmatpush1.bf16.msra.mxu0 %v791
        %805 = vmatprep.subr.bf16.mxu0 0
        %806 = vmatpush1.bf16.msra.mxu0 %v792
        %807 = vmatprep.subr.bf16.mxu0 0
        %808 = vmatpush1.bf16.msra.mxu0 0
        %809 = vmatprep.subr.bf16.mxu0 0
        %810 = vmatpush1.bf16.msra.mxu0 0
        %811 = vmatprep.subr.bf16.mxu0 0
        %812 = vmatpush1.bf16.msra.mxu0 0
        %813 = vmatprep.subr.bf16.mxu0 0
        %814 = vmatpush1.bf16.msra.mxu0 0
        %815 = vmatprep.subr.bf16.mxu0 0
        %816 = vmatpush1.bf16.msra.mxu0 0
        %817 = vmatprep.subr.bf16.mxu0 0
        %818 = vmatpush1.bf16.msra.mxu0 0
        %819 = vmatprep.subr.bf16.mxu0 0
        %820 = vmatpush1.bf16.msra.mxu0 0
        %821 = vmatprep.subr.bf16.mxu0 0
        %822 = vmatpush1.bf16.msra.mxu0 0
        %823 = vmatprep.subr.bf16.mxu0 0
        %824 = vmatpush1.bf16.msra.mxu0 0
        %825 = vmatprep.subr.bf16.mxu0 0
        %826 = vmatpush1.bf16.msra.mxu0 0
        %827 = vmatprep.subr.bf16.mxu0 0
        %828 = vmatpush1.bf16.msra.mxu0 0
        %829 = vmatprep.subr.bf16.mxu0 0
        %830 = vmatpush1.bf16.msra.mxu0 0
        %831 = vmatprep.subr.bf16.mxu0 0
        %832 = vmatpush1.bf16.msra.mxu0 0
        %833 = vmatprep.subr.bf16.mxu0 0
        %834 = vmatpush1.bf16.msra.mxu0 0
        %835 = vmatprep.mubr.bf16.mxu0 0
        %836 = vmatmul.mubr.bf16.gmra.mrb[0].mxu0 %v795
        %v837 = vpop.f32.mrb[0].mxu0
        %v838 = vadd.f32 0.0, %v837
        %v839 = vpop.f32.mrb[0].mxu0
        %v840 = vpop.f32.mrb[0].mxu0
        %v841 = vadd.f32 0.0, %v840
        %v842 = vpop.f32.mrb[0].mxu0
        %843 = vmatprep.mubr.bf16.mxu0 0
        %844 = vmatmul.mubr.bf16.gmra.mrb[0].mxu0 %v798
        %v845 = vpop.f32.mrb[0].mxu0
        %v846 = vadd.f32 0.0, %v845
        %v847 = vpop.f32.mrb[0].mxu0
        %v848 = vpop.f32.mrb[0].mxu0
        %v849 = vadd.f32 0.0, %v848
        %v850 = vpop.f32.mrb[0].mxu0
        %851 = vmatprep.mubr.bf16.mxu0 0
        %852 = vmatmul.mubr.bf16.gmra.mrb[0].mxu0 %v801
        %v853 = vpop.f32.mrb[0].mxu0
        %v854 = vadd.f32 0.0, %v853
        %v855 = vpop.f32.mrb[0].mxu0
        %v856 = vpop.f32.mrb[0].mxu0
        %v857 = vpop.f32.mrb[0].mxu0
        %858 = vdwg.mxu0
        %859 = vxpose.xlu0.b32.start [1/16] %v854, 128
        %860 = vxpose.xlu0.b32.cont [2/16] 0.0, 128
        %861 = vxpose.xlu0.b32.cont [3/16] 0.0, 128
        %862 = vxpose.xlu0.b32.cont [4/16] 0.0, 128
        %863 = vxpose.xlu0.b32.cont [5/16] 0.0, 128
        %864 = vxpose.xlu0.b32.cont [6/16] 0.0, 128
        %865 = vxpose.xlu0.b32.cont [7/16] 0.0, 128
        %866 = vxpose.xlu0.b32.cont [8/16] 0.0, 128
        %867 = vxpose.xlu0.b32.cont [9/16] 0.0, 128
        %868 = vxpose.xlu0.b32.cont [10/16] 0.0, 128
        %869 = vxpose.xlu0.b32.cont [11/16] 0.0, 128
        %870 = vxpose.xlu0.b32.cont [12/16] 0.0, 128
        %871 = vxpose.xlu0.b32.cont [13/16] 0.0, 128
        %872 = vxpose.xlu0.b32.cont [14/16] 0.0, 128
        %873 = vxpose.xlu0.b32.cont [15/16] 0.0, 128
        %874 = vxpose.xlu0.b32.end [16/16] 0.0, 128
        %v875 = vpop.trf.xlu0
        %v876 = vpop.trf.xlu0
        %v877 = vpop.trf.xlu0
        %v878 = vpop.trf.xlu0
        %v879 = vpop.trf.xlu0
        %v880 = vpop.trf.xlu0
        %v881 = vpop.trf.xlu0
        %v882 = vpop.trf.xlu0
        %v883 = vpop.trf.xlu0
        %v884 = vpop.trf.xlu0
        %v885 = vpop.trf.xlu0
        %v886 = vpop.trf.xlu0
        %v887 = vpop.trf.xlu0
        %v888 = vpop.trf.xlu0
        %v889 = vpop.trf.xlu0
        %v890 = vpop.trf.xlu0
        %v891 = vlaneseq
        %v892 = vshrl.u32 %v891, 7
        %v893 = vsub.s32 1, %v892
        %v894 = vrot.slane %v854, %v893
        %896 = vset.pattern.permute.xlu0 0
        %897 = vperm.xlu0 %896, %v875
        %v898 = vpop.permute.xlu0 %897
        %901 = vset.pattern.permute.xlu0 0
        %902 = vperm.xlu0 %901, %v876
        %v903 = vpop.permute.xlu0 %902
        %906 = vset.pattern.permute.xlu0 0
        %907 = vperm.xlu0 %906, %v877
        %v908 = vpop.permute.xlu0 %907
        %911 = vset.pattern.permute.xlu0 0
        %912 = vperm.xlu0 %911, %v878
        %v913 = vpop.permute.xlu0 %912
        %916 = vset.pattern.permute.xlu0 0
        %917 = vperm.xlu0 %916, %v879
        %v918 = vpop.permute.xlu0 %917
        %921 = vset.pattern.permute.xlu0 0
        %922 = vperm.xlu0 %921, %v880
        %v923 = vpop.permute.xlu0 %922
        %926 = vset.pattern.permute.xlu0 0
        %927 = vperm.xlu0 %926, %v881
        %v928 = vpop.permute.xlu0 %927
        %931 = vset.pattern.permute.xlu0 0
        %932 = vperm.xlu0 %931, %v882
        %v933 = vpop.permute.xlu0 %932
        %936 = vset.pattern.permute.xlu0 0
        %937 = vperm.xlu0 %936, %v883
        %v938 = vpop.permute.xlu0 %937
        %941 = vset.pattern.permute.xlu0 0
        %942 = vperm.xlu0 %941, %v884
        %v943 = vpop.permute.xlu0 %942
        %946 = vset.pattern.permute.xlu0 0
        %947 = vperm.xlu0 %946, %v885
        %v948 = vpop.permute.xlu0 %947
        %951 = vset.pattern.permute.xlu0 0
        %952 = vperm.xlu0 %951, %v886
        %v953 = vpop.permute.xlu0 %952
        %956 = vset.pattern.permute.xlu0 0
        %957 = vperm.xlu0 %956, %v887
        %v958 = vpop.permute.xlu0 %957
        %961 = vset.pattern.permute.xlu0 0
        %962 = vperm.xlu0 %961, %v888
        %v963 = vpop.permute.xlu0 %962
        %966 = vset.pattern.permute.xlu0 0
        %967 = vperm.xlu0 %966, %v889
        %v968 = vpop.permute.xlu0 %967
        %971 = vset.pattern.permute.xlu0 0
        %972 = vperm.xlu0 %971, %v890
        %v973 = vpop.permute.xlu0 %972
        %v975 = vadd.f32 %v894, %v898
        %v976 = vadd.f32 %v894, %v903
        %v977 = vadd.f32 %v894, %v908
        %v978 = vadd.f32 %v894, %v913
        %v979 = vadd.f32 %v894, %v918
        %v980 = vadd.f32 %v894, %v923
        %v981 = vadd.f32 %v894, %v928
        %v982 = vadd.f32 %v894, %v933
        %v983 = vadd.f32 %v894, %v938
        %v984 = vadd.f32 %v894, %v943
        %v985 = vadd.f32 %v894, %v948
        %v986 = vadd.f32 %v894, %v953
        %v987 = vadd.f32 %v894, %v958
        %v988 = vadd.f32 %v894, %v963
        %v989 = vadd.f32 %v894, %v968
        %v990 = vadd.f32 %v894, %v973
        %vm991 = vcmp.gt.f32.partialorder %v975, 0.0
        %vm992 = vcmp.gt.f32.partialorder %v976, 0.0
        %vm993 = vcmp.gt.f32.partialorder %v977, 0.0
        %vm994 = vcmp.gt.f32.partialorder %v978, 0.0
        %vm995 = vcmp.gt.f32.partialorder %v979, 0.0
        %vm996 = vcmp.gt.f32.partialorder %v980, 0.0
        %vm997 = vcmp.gt.f32.partialorder %v981, 0.0
        %vm998 = vcmp.gt.f32.partialorder %v982, 0.0
        %vm999 = vcmp.gt.f32.partialorder %v983, 0.0
        %vm1000 = vcmp.gt.f32.partialorder %v984, 0.0
        %vm1001 = vcmp.gt.f32.partialorder %v985, 0.0
        %vm1002 = vcmp.gt.f32.partialorder %v986, 0.0
        %vm1003 = vcmp.gt.f32.partialorder %v987, 0.0
        %vm1004 = vcmp.gt.f32.partialorder %v988, 0.0
        %vm1005 = vcmp.gt.f32.partialorder %v989, 0.0
        %vm1006 = vcmp.gt.f32.partialorder %v990, 0.0
        %v1007 = vmul.f32 %v975, 0.2
        %v1008 = vmul.f32 %v976, 0.2
        %v1009 = vmul.f32 %v977, 0.2
        %v1010 = vmul.f32 %v978, 0.2
        %v1011 = vmul.f32 %v979, 0.2
        %v1012 = vmul.f32 %v980, 0.2
        %v1013 = vmul.f32 %v981, 0.2
        %v1014 = vmul.f32 %v982, 0.2
        %v1015 = vmul.f32 %v983, 0.2
        %v1016 = vmul.f32 %v984, 0.2
        %v1017 = vmul.f32 %v985, 0.2
        %v1018 = vmul.f32 %v986, 0.2
        %v1019 = vmul.f32 %v987, 0.2
        %v1020 = vmul.f32 %v988, 0.2
        %v1021 = vmul.f32 %v989, 0.2
        %v1022 = vmul.f32 %v990, 0.2
        %v1023 = vsel %vm991, %v975, %v1007
        %v1024 = vsel %vm992, %v976, %v1008
        %v1025 = vsel %vm993, %v977, %v1009
        %v1026 = vsel %vm994, %v978, %v1010
        %v1027 = vsel %vm995, %v979, %v1011
        %v1028 = vsel %vm996, %v980, %v1012
        %v1029 = vsel %vm997, %v981, %v1013
        %v1030 = vsel %vm998, %v982, %v1014
        %v1031 = vsel %vm999, %v983, %v1015
        %v1032 = vsel %vm1000, %v984, %v1016
        %v1033 = vsel %vm1001, %v985, %v1017
        %v1034 = vsel %vm1002, %v986, %v1018
        %v1035 = vsel %vm1003, %v987, %v1019
        %v1036 = vsel %vm1004, %v988, %v1020
        %v1037 = vsel %vm1005, %v989, %v1021
        %v1038 = vsel %vm1006, %v990, %v1022
        %v1039 = vsel %vm570, %v1023, -1e+30
        %v1040 = vsel %vm571, %v1024, -1e+30
        %v1041 = vsel %vm572, %v1025, -1e+30
        %v1042 = vsel %vm573, %v1026, -1e+30
        %v1043 = vsel %vm574, %v1027, -1e+30
        %v1044 = vsel %vm575, %v1028, -1e+30
        %v1045 = vsel %vm576, %v1029, -1e+30
        %v1046 = vsel %vm577, %v1030, -1e+30
        %v1047 = vsel %vm578, %v1031, -1e+30
        %v1048 = vsel %vm579, %v1032, -1e+30
        %v1049 = vsel %vm580, %v1033, -1e+30
        %v1050 = vsel %vm581, %v1034, -1e+30
        %v1051 = vsel %vm582, %v1035, -1e+30
        %v1052 = vsel %vm583, %v1036, -1e+30
        %v1053 = vsel %vm584, %v1037, -1e+30
        %v1054 = vsel %vm585, %v1038, -1e+30
        %v1055 = vmax.f32 %v1039, %v1043
        %v1056 = vmax.f32 %v1040, %v1044
        %v1057 = vmax.f32 %v1041, %v1045
        %v1058 = vmax.f32 %v1042, %v1046
        %v1059 = vmax.f32 %v1055, %v1047
        %v1060 = vmax.f32 %v1056, %v1048
        %v1061 = vmax.f32 %v1057, %v1049
        %v1062 = vmax.f32 %v1058, %v1050
        %v1063 = vmax.f32 %v1059, %v1051
        %v1064 = vmax.f32 %v1060, %v1052
        %v1065 = vmax.f32 %v1061, %v1053
        %v1066 = vmax.f32 %v1062, %v1054
        %v1067 = vmax.f32 %v1063, %v1064
        %v1068 = vmax.f32 %v1065, %v1066
        %v1069 = vmax.f32 %v1067, %v1068
        %v1070 = vrot.slane %v1069, 4
        %v1071 = vmax.f32 %v1069, %v1070
        %v1072 = vrot.slane %v1071, 2
        %v1073 = vmax.f32 %v1071, %v1072
        %v1074 = vrot.slane %v1073, 1
        %v1075 = vmax.f32 %v1073, %v1074
        %v1076 = vsub.f32 %v1039, %v1075
        %v1077 = vsub.f32 %v1040, %v1075
        %v1078 = vsub.f32 %v1041, %v1075
        %v1079 = vsub.f32 %v1042, %v1075
        %v1080 = vsub.f32 %v1043, %v1075
        %v1081 = vsub.f32 %v1044, %v1075
        %v1082 = vsub.f32 %v1045, %v1075
        %v1083 = vsub.f32 %v1046, %v1075
        %v1084 = vsub.f32 %v1047, %v1075
        %v1085 = vsub.f32 %v1048, %v1075
        %v1086 = vsub.f32 %v1049, %v1075
        %v1087 = vsub.f32 %v1050, %v1075
        %v1088 = vsub.f32 %v1051, %v1075
        %v1089 = vsub.f32 %v1052, %v1075
        %v1090 = vsub.f32 %v1053, %v1075
        %v1091 = vsub.f32 %v1054, %v1075
        %v1092 = vmul.f32 %v1076, 1.442695
        %v1093 = vpow.pop %v1092
        %v1094 = vmul.f32 %v1077, 1.442695
        %v1095 = vpow.pop %v1094
        %v1096 = vmul.f32 %v1078, 1.442695
        %v1097 = vpow.pop %v1096
        %v1098 = vmul.f32 %v1079, 1.442695
        %v1099 = vpow.pop %v1098
        %v1100 = vmul.f32 %v1080, 1.442695
        %v1101 = vpow.pop %v1100
        %v1102 = vmul.f32 %v1081, 1.442695
        %v1103 = vpow.pop %v1102
        %v1104 = vmul.f32 %v1082, 1.442695
        %v1105 = vpow.pop %v1104
        %v1106 = vmul.f32 %v1083, 1.442695
        %v1107 = vpow.pop %v1106
        %v1108 = vmul.f32 %v1084, 1.442695
        %v1109 = vpow.pop %v1108
        %v1110 = vmul.f32 %v1085, 1.442695
        %v1111 = vpow.pop %v1110
        %v1112 = vmul.f32 %v1086, 1.442695
        %v1113 = vpow.pop %v1112
        %v1114 = vmul.f32 %v1087, 1.442695
        %v1115 = vpow.pop %v1114
        %v1116 = vmul.f32 %v1088, 1.442695
        %v1117 = vpow.pop %v1116
        %v1118 = vmul.f32 %v1089, 1.442695
        %v1119 = vpow.pop %v1118
        %v1120 = vmul.f32 %v1090, 1.442695
        %v1121 = vpow.pop %v1120
        %v1122 = vmul.f32 %v1091, 1.442695
        %v1123 = vpow.pop %v1122
        %v1124 = vadd.f32 %v1093, %v1095
        %v1125 = vadd.f32 %v1124, %v1097
        %v1126 = vadd.f32 %v1125, %v1099
        %v1127 = vadd.f32 %v1126, %v1101
        %v1128 = vadd.f32 %v1127, %v1103
        %v1129 = vadd.f32 %v1128, %v1105
        %v1130 = vadd.f32 %v1129, %v1107
        %v1131 = vadd.f32 %v1130, %v1109
        %v1132 = vadd.f32 %v1131, %v1111
        %v1133 = vadd.f32 %v1132, %v1113
        %v1134 = vadd.f32 %v1133, %v1115
        %v1135 = vadd.f32 %v1134, %v1117
        %v1136 = vadd.f32 %v1135, %v1119
        %v1137 = vadd.f32 %v1136, %v1121
        %v1138 = vadd.f32 %v1137, %v1123
        %v1139 = vrot.slane %v1138, 4
        %v1140 = vadd.f32 %v1138, %v1139
        %v1141 = vrot.slane %v1140, 2
        %v1142 = vadd.f32 %v1140, %v1141
        %v1143 = vrot.slane %v1142, 1
        %v1144 = vadd.f32 %v1142, %v1143
        %v1145 = vrcp.pop %v1144
        %v1146 = vmul.f32 %v1093, %v1145
        %v1147 = vmul.f32 %v1095, %v1145
        %v1148 = vmul.f32 %v1097, %v1145
        %v1149 = vmul.f32 %v1099, %v1145
        %v1150 = vmul.f32 %v1101, %v1145
        %v1151 = vmul.f32 %v1103, %v1145
        %v1152 = vmul.f32 %v1105, %v1145
        %v1153 = vmul.f32 %v1107, %v1145
        %v1154 = vmul.f32 %v1109, %v1145
        %v1155 = vmul.f32 %v1111, %v1145
        %v1156 = vmul.f32 %v1113, %v1145
        %v1157 = vmul.f32 %v1115, %v1145
        %v1158 = vmul.f32 %v1117, %v1145
        %v1159 = vmul.f32 %v1119, %v1145
        %v1160 = vmul.f32 %v1121, %v1145
        %v1161 = vmul.f32 %v1123, %v1145
        %v1162 = vpack.c.bf16 %v841, %v838
        %v1163 = vpack.c.bf16 %v849, %v846
        %v1164 = vpack.c.bf16 %v1147, %v1146
        %v1165 = vpack.c.bf16 %v1149, %v1148
        %v1166 = vpack.c.bf16 %v1151, %v1150
        %v1167 = vpack.c.bf16 %v1153, %v1152
        %v1168 = vpack.c.bf16 %v1155, %v1154
        %v1169 = vpack.c.bf16 %v1157, %v1156
        %v1170 = vpack.c.bf16 %v1159, %v1158
        %v1171 = vpack.c.bf16 %v1161, %v1160
        %1173 = vset.pattern.permute.xlu0 0
        %1174 = vperm.xlu0 %1173, %v203
        %v1175 = vpop.permute.xlu0 %1174
        %1178 = vset.pattern.permute.xlu0 0
        %1179 = vperm.xlu0 %1178, %v204
        %v1180 = vpop.permute.xlu0 %1179
        %1183 = vset.pattern.permute.xlu0 0
        %1184 = vperm.xlu0 %1183, %v205
        %v1185 = vpop.permute.xlu0 %1184
        %1188 = vset.pattern.permute.xlu0 0
        %1189 = vperm.xlu0 %1188, %v206
        %v1190 = vpop.permute.xlu0 %1189
        %1192 = vmatprep.subr.bf16.mxu0 0
        %1193 = vmatpush1.bf16.msra.mxu0 %v1164
        %1194 = vmatprep.subr.bf16.mxu0 0
        %1195 = vmatpush1.bf16.msra.mxu0 %v1165
        %1196 = vmatprep.subr.bf16.mxu0 0
        %1197 = vmatpush1.bf16.msra.mxu0 %v1166
        %1198 = vmatprep.subr.bf16.mxu0 0
        %1199 = vmatpush1.bf16.msra.mxu0 %v1167
        %1200 = vmatprep.subr.bf16.mxu0 0
        %1201 = vmatpush1.bf16.msra.mxu0 %v1168
        %1202 = vmatprep.subr.bf16.mxu0 0
        %1203 = vmatpush1.bf16.msra.mxu0 %v1169
        %1204 = vmatprep.subr.bf16.mxu0 0
        %1205 = vmatpush1.bf16.msra.mxu0 %v1170
        %1206 = vmatprep.subr.bf16.mxu0 0
        %1207 = vmatpush1.bf16.msra.mxu0 %v1171
        %1208 = vmatprep.subr.bf16.mxu0 0
        %1209 = vmatpush1.bf16.msra.mxu0 0
        %1210 = vmatprep.subr.bf16.mxu0 0
        %1211 = vmatpush1.bf16.msra.mxu0 0
        %1212 = vmatprep.subr.bf16.mxu0 0
        %1213 = vmatpush1.bf16.msra.mxu0 0
        %1214 = vmatprep.subr.bf16.mxu0 0
        %1215 = vmatpush1.bf16.msra.mxu0 0
        %1216 = vmatprep.subr.bf16.mxu0 0
        %1217 = vmatpush1.bf16.msra.mxu0 0
        %1218 = vmatprep.subr.bf16.mxu0 0
        %1219 = vmatpush1.bf16.msra.mxu0 0
        %1220 = vmatprep.subr.bf16.mxu0 0
        %1221 = vmatpush1.bf16.msra.mxu0 0
        %1222 = vmatprep.subr.bf16.mxu0 0
        %1223 = vmatpush1.bf16.msra.mxu0 0
        %1224 = vmatprep.mubr.bf16.mxu0 0
        %1225 = vmatmul.mubr.bf16.gmra.mrb[0].mxu0 %v1162
        %v1226 = vpop.f32.mrb[0].mxu0
        %v1227 = vadd.f32 %v1175, %v1226
        %v1228 = vpop.f32.mrb[0].mxu0
        %v1229 = vpop.f32.mrb[0].mxu0
        %v1230 = vadd.f32 %v1180, %v1229
        %v1231 = vpop.f32.mrb[0].mxu0
        %1232 = vmatprep.mubr.bf16.mxu0 0
        %1233 = vmatmul.mubr.bf16.gmra.mrb[0].mxu0 %v1163
        %v1234 = vpop.f32.mrb[0].mxu0
        %v1235 = vadd.f32 %v1185, %v1234
        %v1236 = vpop.f32.mrb[0].mxu0
        %v1237 = vpop.f32.mrb[0].mxu0
        %v1238 = vadd.f32 %v1190, %v1237
        %v1239 = vpop.f32.mrb[0].mxu0
        %1240 = vdwg.mxu0
        %v1241 = vpack.c.bf16 %v1230, %v1227
        %v1242 = vpack.c.bf16 %v1238, %v1235
        %v1245 = vunpack.c.l.b16 %v1241
        %v1246 = vunpack.c.h.b16 %v1241
        %v1247 = vunpack.c.l.b16 %v1242
        %v1248 = vunpack.c.h.b16 %v1242
        %v1249 = vpack.c.b16 %v1245, %v1245
        %v1250 = vpack.c.b16 %v1246, %v1246
        %v1251 = vpack.c.b16 %v1247, %v1247
        %v1252 = vpack.c.b16 %v1248, %v1248
        %1257 = vst [vmem:[%s176] sm:$0xf] %v1249
        %1258 = vst [vmem:[%s176 + $0x4] sm:$0xf] %v1250
        %1259 = vst [vmem:[%s176 + $0x8] sm:$0xf] %v1251
        %1260 = vst [vmem:[%s176 + $0xc] sm:$0xf] %v1252
        %s1261 = sand.u32 %s98, 1
        %s1262 = scalar_lea.sflag [#allocation3], %s1261
        %s1263 = sand.u32 %s98, 1
        %s1264 = smul.addr %s1263, 16
        %s1265 = scalar_lea.vmem [#allocation2], %s1264
        // Predicated region
        $region33: #{gnn_vn_forward.1} parent=31 // pred_check
          %p1266 = pneg %p108
        $region34: #{gnn_vn_forward.1} parent=31 // pred_check_branch
          %1268 = sbr.rel (%p1266) target = $region36
        $region35: #{gnn_vn_forward.1} parent=31 // pred_region
          %s1270 = ssub.s32 256, 256
          %1271 = vsyncadd %s1262, %s1270
          %s1272 = smul.addr %s17, 4
          %s1273 = smul.addr %s1272, 64
          %s1274 = scalar_lea.hbm %s3, %s1273
          %s1275 = sshll.u32 %s1265, 4
          %s1276 = int_to_ptr.vmem [resolvable:$true] %s1275
          %1281 = dma.vmem_to_hbm [thread:$0]  %s1276, 256, %s1274, %s1262, 64, 64, 4
        $region36: #{gnn_vn_forward.1} parent=31 // pred_fallthru
          _
      $region32: #{gnn_vn_forward.1} parent=5 // pred_fallthru
        _
      %p1282 = scmp.le.s32.totalorder 2, %s12
      // Predicated region
      $region37: #{gnn_vn_forward.1} parent=5 // pred_check
        %p1283 = pneg %p1282
      $region38: #{gnn_vn_forward.1} parent=5 // pred_check_branch
        %1285 = sbr.rel (%p1283) target = $region40
      $region39: #{gnn_vn_forward.1} parent=5 // pred_region
        %s1286 = ssub.s32 %s12, 2
        // Predicated region
        $region41: #{gnn_vn_forward.1} parent=39 // pred_check
          %p1287 = pneg %p114
        $region42: #{gnn_vn_forward.1} parent=39 // pred_check_branch
          %1289 = sbr.rel (%p1287) target = $region44
        $region43: #{gnn_vn_forward.1} parent=39 // pred_region
          %s1290 = sand.u32 %s99, 1
          %s1291 = scalar_lea.sflag [#allocation3], %s1290
          %s1292 = sand.u32 %s99, 1
          %s1293 = smul.addr %s1292, 16
          %s1294 = scalar_lea.vmem [#allocation2], %s1293
          %1295 = dma.done %s1291, 256
        $region44: #{gnn_vn_forward.1} parent=39 // pred_fallthru
          _
      $region40: #{gnn_vn_forward.1} parent=5 // pred_fallthru
        _
    $region6: #{gnn_vn_forward.1} parent=1 // loop_footer
      %s16 = sadd.s32 1, %s12
    $region7: #{gnn_vn_forward.1} parent=1 // loop_footer_branch
      %11 = sbr.rel target = $region3
    $region8: #{gnn_vn_forward.1} parent=1 // loop_exit
      _
    %1296 = vsyncpa [#allocation3], 1
    %s1297 = scalar_lea.sflag [#allocation3], 1
    %1298 = vsyncpa %s1297, 1

</llo_original>
